<compile_context>
chip_gen: v7x
topology: tpu7x:2x2x1
jax: 0.10.0
libtpu: 0.0.40
codegen_flags: <defaults>
</compile_context>

<pallas_src>
import jax
import jax.numpy as jnp
from jax.experimental import pallas as pl
from jax.experimental.pallas import tpu as pltpu

BETA = 2.5


def _make_kernel(tm, valid_rows_last, needs_mask):
    def kernel(out_ref, lab_ref, partial_ref, acc_ref):
        i = pl.program_id(1)

        @pl.when(i == 0)
        def _init():
            acc_ref[...] = jnp.zeros_like(acc_ref)

        o = out_ref[...].astype(jnp.float32)
        l = lab_ref[...].astype(jnp.float32)

        diff = o - l
        sq = diff * diff
        # 1/(1 + exp(10000*o*l)) == sigmoid(-10000*o*l) == 0.5*(1 + tanh(-5000*o*l)).
        # tanh runs on the EUP and saturates cleanly (no reliance on 1/inf == 0).
        sig = 0.5 * (1.0 + jnp.tanh(-5000.0 * (o * l)))
        denom = (1.0 + BETA) - (BETA - 0.5) * sig          # == 1 + adj, bounded in [1.5, 3.5]
        # Approx EUP reciprocal + one Newton refinement (~1e-5 rel err) instead of the
        # exact f32 divide (saves the 4-6 Newton VALU ops of a full-precision divide).
        r0 = pl.reciprocal(denom, approx=True)
        r = r0 * (2.0 - denom * r0)
        loss = (BETA * sq) * r

        if needs_mask:
            # Only the globally-last block can be partial (rows % tm != 0); its trailing
            # rows hold stale VMEM data and must be excluded.  The mask work only executes
            # on that single block; every other block takes the unmasked branch.
            is_partial = jnp.logical_and(
                pl.program_id(0) == pl.num_programs(0) - 1,
                i == pl.num_programs(1) - 1,
            )

            @pl.when(jnp.logical_not(is_partial))
            def _acc_full():
                acc_ref[...] += jnp.sum(loss, axis=0, keepdims=True)

            @pl.when(is_partial)
            def _acc_masked():
                row_ids = jax.lax.broadcasted_iota(jnp.int32, (tm, 1), 0)
                keep = row_ids < valid_rows_last
                acc_ref[...] += jnp.sum(jnp.where(keep, loss, 0.0), axis=0, keepdims=True)
        else:
            acc_ref[...] += jnp.sum(loss, axis=0, keepdims=True)

        @pl.when(i == pl.num_programs(1) - 1)
        def _finalize():
            partial_ref[...] = jnp.sum(acc_ref[...]).reshape(1, 1, 1)

    return kernel


def _default_config():
    """(n_shards, row_tile) chosen per TPU generation."""
    kind = ""
    try:
        kind = (jax.devices()[0].device_kind or "").lower()
    except Exception:
        pass
    if "v7" in kind:
        # 2 TensorCores; bigger tiles amortize the ~0.35 us per-step overhead against
        # ~3.2 TB/s HBM. Budget: 2 inputs x 2 buffers x (2048*512*4 B) = 16 MiB < 32 MiB scoped.
        return 2, 2048
    # Single-TC chips (v5e/v6e): the 512-row tile already sits near the HBM roofline and the
    # shard axis would just be a serialized outer loop.
    return 1, 512


def adj_mse_loss_2(outputs, labels, *, lane=512, row_tile=None, n_shards=None):
    """outputs: [..., 1] or same shape as labels; labels: any shape. Returns scalar f32."""
    # torch.squeeze equivalent for the typical regression-head layout; use the explicit
    # trailing axis so B == 1 or N == 1 cannot silently change semantics.
    if outputs.ndim == labels.ndim + 1 and outputs.shape[-1] == 1:
        outputs = jnp.squeeze(outputs, axis=-1)
    else:
        outputs = jnp.squeeze(outputs)
    assert outputs.shape == labels.shape, (outputs.shape, labels.shape)

    auto_shards, auto_tile = _default_config()
    if n_shards is None:
        n_shards = auto_shards
    if row_tile is None:
        row_tile = auto_tile

    n = outputs.size  # true element count for the mean
    of = outputs.reshape(-1)
    lf = labels.reshape(-1)

    C = lane
    rem = n % C
    if rem == 0:
        # Aligned case: metadata-only reshape — no HBM rewrite of the inputs.
        rows = n // C
        of2 = of.reshape(rows, C)
        lf2 = lf.reshape(rows, C)
    else:
        # Ragged tail inside the last lane-row: minimal zero-pad (zeros contribute exactly 0
        # to the loss sum).  This is the only path that copies the inputs once.
        rows = n // C + 1
        pad = rows * C - n
        of2 = jnp.pad(of, (0, pad)).reshape(rows, C)
        lf2 = jnp.pad(lf, (0, pad)).reshape(rows, C)

    # Row tile: a full-extent block (always layout-legal) when rows are few, else a
    # multiple-of-8 tile; the lane dim is always the full (multiple-of-128) width C.
    tm = rows if rows <= row_tile else row_tile
    blocks = -(-rows // tm)
    if blocks % n_shards != 0:
        n_shards = 1            # keep every grid block at least partially in-bounds
    steps = blocks // n_shards

    needs_mask = (rows % tm) != 0
    valid_rows_last = rows - (blocks - 1) * tm

    kernel = _make_kernel(tm, valid_rows_last, needs_mask)

    cost = pl.CostEstimate(
        flops=12 * n,
        transcendentals=2 * n,
        bytes_accessed=of2.size * of2.dtype.itemsize
        + lf2.size * lf2.dtype.itemsize
        + 4 * n_shards,
    )

    partials = pl.pallas_call(
        kernel,
        out_shape=jax.ShapeDtypeStruct((n_shards, 1, 1), jnp.float32),
        grid_spec=pltpu.PrefetchScalarGridSpec(
            num_scalar_prefetch=0,
            grid=(n_shards, steps),
            in_specs=[
                pl.BlockSpec((tm, C), lambda s, i: (s * steps + i, 0)),
                pl.BlockSpec((tm, C), lambda s, i: (s * steps + i, 0)),
            ],
            out_specs=pl.BlockSpec((1, 1, 1), lambda s, i: (s, 0, 0)),
            scratch_shapes=[pltpu.VMEM((1, C), jnp.float32)],
        ),
        compiler_params=pltpu.CompilerParams(
            dimension_semantics=("parallel", "arbitrary"),
        ),
        cost_estimate=cost,
    )(of2, lf2)

    return jnp.sum(partials) / jnp.float32(n)


if __name__ == "__main__":
    def reference(outputs, labels):
        if outputs.ndim == labels.ndim + 1 and outputs.shape[-1] == 1:
            o = jnp.squeeze(outputs, axis=-1)
        else:
            o = jnp.squeeze(outputs)
        adj = BETA - (BETA - 0.5) / (1.0 + jnp.exp(10000.0 * o * labels))
        return jnp.mean(BETA * (o - labels) ** 2 / (1.0 + adj))

    def make_case(key, shape_o, shape_l, scale=0.05):
        k1, k2 = jax.random.split(key)
        o = jax.random.normal(k1, shape_o, dtype=jnp.float32) * scale
        l = jax.random.normal(k2, shape_l, dtype=jnp.float32) * scale
        return o, l

    keys = jax.random.split(jax.random.PRNGKey(0), 4)
    results = []

    # Case 1: ragged element count (600) -> minimal zero-pad path, single full-extent block.
    o1, l1 = make_case(keys[0], (6, 100, 1), (6, 100))
    results.append((jax.block_until_ready(adj_mse_loss_2(o1, l1)), reference(o1, l1)))

    # Case 2: lane-aligned (4096) -> zero-copy reshape path.
    o2, l2 = make_case(keys[1], (2, 2048, 1), (2, 2048))
    results.append((jax.block_until_ready(adj_mse_loss_2(o2, l2)), reference(o2, l2)))

    # Case 3: aligned, multi-block grid with a partial (masked) last row-block (rows=10, tm=8).
    o3, l3 = make_case(keys[2], (10, 512, 1), (10, 512))
    results.append((jax.block_until_ready(adj_mse_loss_2(o3, l3, row_tile=8)),
                    reference(o3, l3)))

    # Case 4: aligned, sharded 2-D grid (rows=16, tm=8, 2 shards) — mimics the v7x layout.
    o4, l4 = make_case(keys[3], (16, 512, 1), (16, 512))
    results.append((jax.block_until_ready(adj_mse_loss_2(o4, l4, row_tile=8, n_shards=2)),
                    reference(o4, l4)))

    # Tolerance accounts for the approx-reciprocal (+1 Newton step) and EUP tanh paths.
    for got, ref in results:
        assert jnp.allclose(got, ref, rtol=5e-4, atol=1e-7), (got, ref)

    print("KERNEL_OK")
</pallas_src>

<mosaic_0001>
module attributes {stable_mosaic.version = 11 : i64} {
  func.func @kernel(%arg0: i32, %arg1: i32, %arg2: memref<2x512xf32, #tpu.memory_space<vmem>>, %arg3: memref<2x512xf32, #tpu.memory_space<vmem>>, %arg4: memref<1x1x1xf32, #tpu.memory_space<vmem>>, %arg5: memref<1x512xf32, #tpu.memory_space<vmem>>) attributes {dimension_semantics = [#tpu.dimension_semantics<parallel>, #tpu.dimension_semantics<arbitrary>], iteration_bounds = array<i64: 1, 1>, scalar_prefetch = 0 : i64, scratch_operands = 1 : i64, tpu.core_type = #tpu.core_type<tc>, window_params = [{transform_indices = @transform_0, window_bounds = array<i64: 2, 512>}, {transform_indices = @transform_1, window_bounds = array<i64: 2, 512>}, {transform_indices = @transform_2, window_bounds = array<i64: 1, 1, 1>}]} {
    %c0_i32 = arith.constant 0 : i32
    %0 = arith.cmpi eq, %arg1, %c0_i32 : i32
    %1 = arith.extui %0 : i1 to i32
    %c0_i32_0 = arith.constant 0 : i32
    %2 = arith.cmpi ne, %1, %c0_i32_0 : i32
    scf.if %2 {
      %cst_17 = arith.constant 0.000000e+00 : f32
      %35 = vector.broadcast %cst_17 : f32 to vector<1x512xf32>
      %c0_18 = arith.constant 0 : index
      %c0_19 = arith.constant 0 : index
      %36 = vector.load %arg5[%c0_18, %c0_19] : memref<1x512xf32, #tpu.memory_space<vmem>>, vector<1x512xf32>
      tpu.vector_store %arg5[%c0_18, %c0_19], %35 {strides = array<i32>} : memref<1x512xf32, #tpu.memory_space<vmem>>, vector<1x512xf32>,
    } else {
    }
    %c0 = arith.constant 0 : index
    %c0_1 = arith.constant 0 : index
    %3 = vector.load %arg2[%c0, %c0_1] : memref<2x512xf32, #tpu.memory_space<vmem>>, vector<2x512xf32>
    %c0_2 = arith.constant 0 : index
    %c0_3 = arith.constant 0 : index
    %4 = vector.load %arg3[%c0_2, %c0_3] : memref<2x512xf32, #tpu.memory_space<vmem>>, vector<2x512xf32>
    %5 = arith.subf %3, %4 : vector<2x512xf32>
    %6 = arith.mulf %5, %5 : vector<2x512xf32>
    %7 = arith.mulf %3, %4 : vector<2x512xf32>
    %cst = arith.constant -5.000000e+03 : f32
    %8 = vector.broadcast %cst : f32 to vector<2x512xf32>
    %9 = arith.mulf %8, %7 : vector<2x512xf32>
    %10 = math.tanh %9 : vector<2x512xf32>
    %cst_4 = arith.constant 1.000000e+00 : f32
    %11 = vector.broadcast %cst_4 : f32 to vector<2x512xf32>
    %12 = arith.addf %11, %10 : vector<2x512xf32>
    %cst_5 = arith.constant 5.000000e-01 : f32
    %13 = vector.broadcast %cst_5 : f32 to vector<2x512xf32>
    %14 = arith.mulf %13, %12 : vector<2x512xf32>
    %cst_6 = arith.constant 2.000000e+00 : f32
    %15 = vector.broadcast %cst_6 : f32 to vector<2x512xf32>
    %16 = arith.mulf %15, %14 : vector<2x512xf32>
    %cst_7 = arith.constant 3.500000e+00 : f32
    %17 = vector.broadcast %cst_7 : f32 to vector<2x512xf32>
    %18 = arith.subf %17, %16 : vector<2x512xf32>
    %19 = tpu.reciprocal %18 {approx = true} : vector<2x512xf32> -> vector<2x512xf32>
    %20 = arith.mulf %18, %19 : vector<2x512xf32>
    %cst_8 = arith.constant 2.000000e+00 : f32
    %21 = vector.broadcast %cst_8 : f32 to vector<2x512xf32>
    %22 = arith.subf %21, %20 : vector<2x512xf32>
    %23 = arith.mulf %19, %22 : vector<2x512xf32>
    %cst_9 = arith.constant 2.500000e+00 : f32
    %24 = vector.broadcast %cst_9 : f32 to vector<2x512xf32>
    %25 = arith.mulf %24, %6 : vector<2x512xf32>
    %26 = arith.mulf %25, %23 : vector<2x512xf32>
    %c0_10 = arith.constant 0 : index
    %c0_11 = arith.constant 0 : index
    %27 = vector.load %arg5[%c0_10, %c0_11] : memref<1x512xf32, #tpu.memory_space<vmem>>, vector<1x512xf32>
    %cst_12 = arith.constant dense<0.000000e+00> : vector<512xf32>
    %28 = vector.multi_reduction <add>, %26, %cst_12 [0] : vector<2x512xf32> to vector<512xf32>
    %29 = vector.shape_cast %28 : vector<512xf32> to vector<1x512xf32>
    %30 = arith.addf %27, %29 : vector<1x512xf32>
    %c0_13 = arith.constant 0 : index
    %c0_14 = arith.constant 0 : index
    %31 = vector.load %arg5[%c0_13, %c0_14] : memref<1x512xf32, #tpu.memory_space<vmem>>, vector<1x512xf32>
    tpu.vector_store %arg5[%c0_13, %c0_14], %30 {strides = array<i32>} : memref<1x512xf32, #tpu.memory_space<vmem>>, vector<1x512xf32>,
    %c0_i32_15 = arith.constant 0 : i32
    %32 = arith.cmpi eq, %arg1, %c0_i32_15 : i32
    %33 = arith.extui %32 : i1 to i32
    %c0_i32_16 = arith.constant 0 : i32
    %34 = arith.cmpi ne, %33, %c0_i32_16 : i32
    scf.if %34 {
      %c0_17 = arith.constant 0 : index
      %c0_18 = arith.constant 0 : index
      %35 = vector.load %arg5[%c0_17, %c0_18] : memref<1x512xf32, #tpu.memory_space<vmem>>, vector<1x512xf32>
      %36 = vector.shape_cast %35 : vector<1x512xf32> to vector<1x1x512xf32>
      %cst_19 = arith.constant dense<0.000000e+00> : vector<1xf32>
      %37 = vector.multi_reduction <add>, %36, %cst_19 [1, 2] : vector<1x1x512xf32> to vector<1xf32>
      %38 = vector.shape_cast %37 : vector<1xf32> to vector<1x1x1xf32>
      %39 = vector.extract %38[0, 0, 0] : f32 from vector<1x1x1xf32>
      %40 = vector.broadcast %39 : f32 to vector<1x1x1xf32>
      %c0_20 = arith.constant 0 : index
      %c0_21 = arith.constant 0 : index
      %c0_22 = arith.constant 0 : index
      %41 = vector.load %arg4[%c0_20, %c0_21, %c0_22] : memref<1x1x1xf32, #tpu.memory_space<vmem>>, vector<1x1x1xf32>
      tpu.vector_store %arg4[%c0_20, %c0_21, %c0_22], %40 {strides = array<i32>} : memref<1x1x1xf32, #tpu.memory_space<vmem>>, vector<1x1x1xf32>,
    } else {
    }
    return
  }
  func.func @transform_0(%arg0: i32, %arg1: i32) -> (i32, i32) {
    %c1_i32 = arith.constant 1 : i32
    %0 = arith.muli %arg0, %c1_i32 : i32
    %1 = arith.addi %0, %arg1 : i32
    %c0_i32 = arith.constant 0 : i32
    %c0_i32_0 = arith.constant 0 : i32
    return %1, %c0_i32 : i32, i32
  }
  func.func @transform_1(%arg0: i32, %arg1: i32) -> (i32, i32) {
    %c1_i32 = arith.constant 1 : i32
    %0 = arith.muli %arg0, %c1_i32 : i32
    %1 = arith.addi %0, %arg1 : i32
    %c0_i32 = arith.constant 0 : i32
    %c0_i32_0 = arith.constant 0 : i32
    return %1, %c0_i32 : i32, i32
  }
  func.func @transform_2(%arg0: i32, %arg1: i32) -> (i32, i32, i32) {
    %c0_i32 = arith.constant 0 : i32
    %c0_i32_0 = arith.constant 0 : i32
    %c0_i32_1 = arith.constant 0 : i32
    return %arg0, %c0_i32, %c0_i32_0 : i32, i32, i32
  }
}

</mosaic_0001>

<llo_original>
// kernel: tpu_custom_call.1
$region0: #{tpu_custom_call.1}
  #allocation0 [shape = 'u32[]', space=smem, size = 0x4, offset = 0x4, fixed_abs, tag = 'smem constant byte address 0x4 - core index']
  #allocation1 [shape = 'u32[144,128]{1,0:T(1,128)}', space=vmem, size = 0x12000, scoped, tag = 'internal scratch']
  #allocation2 [shape = 'f32[1,512]{1,0:T(1,128)}', space=vmem, size = 0x800, scoped, tag = 'scratch operand']
  %s0 = inlined_call_operand.hbm [shape: f32[2,512], index: 0, kind: input, shape index: {}]
  %s1 = inlined_call_operand.hbm [shape: f32[2,512], index: 1, kind: input, shape index: {}]
  %s2 = inlined_call_operand.hbm [shape: f32[1,1,1], index: 2, kind: output, shape index: {}]
  %s3 = sld [smem:[#allocation0]]
  $region34: #{tpu_custom_call.1} parent=0
    _
  %s5 = ssub.s32 1, %s3
  %s6 = scalar_select 0, %s5, %s3
  $region1: #{tpu_custom_call.1} parent=0
    #allocation3 [shape = 'u8[4096]{0}', space=vmem, size = 0x1000, scoped, tag = 'input window, operand 0, single buffered']
    #allocation4 [shape = 's32[1]{0}', space=sflag, size = 0x4, scoped, tag = 'scoped memory for tpu_custom_call.1']
    #allocation5 [shape = 's32[1]{0}', space=sflag, size = 0x4, scoped, tag = 'scoped memory for tpu_custom_call.1']
    #allocation6 [shape = 'u8[4096]{0}', space=vmem, size = 0x1000, scoped, tag = 'input window, operand 1, single buffered']
    #allocation7 [shape = 's32[1]{0}', space=sflag, size = 0x4, scoped, tag = 'scoped memory for tpu_custom_call.1']
    #allocation8 [shape = 'u8[512]{0}', space=vmem, size = 0x400, scoped, tag = 'output window, operand 0, single buffered']
    %7 = vsyncpa [#allocation4], 0
    %8 = vsyncpa [#allocation7], 0
    %9 = vsyncpa [#allocation5], 0
    // Predicated region
    $region2: #{tpu_custom_call.1} parent=1 // pred_check
      _
    $region3: #{tpu_custom_call.1} parent=1 // pred_check_branch
      %11 = sbr.rel (0) target = $region5
    $region4: #{tpu_custom_call.1} parent=1 // pred_region
      %s12 = sadd.s32 0, 0
      %s14 = ssub.s32 128, 128
      %15 = vsyncadd [#allocation4], %s14
      %s16 = smul.addr %s12, 4
      %s17 = smul.addr %s16, 32
      %s18 = scalar_lea.hbm %s0, %s17
      %s20 = sshll.u32 [#allocation3], 4
      %s21 = int_to_ptr.vmem [resolvable:$true] %s20
      %23 = dma.hbm_to_vmem [thread:$0]  %s18, 128, %s21, [#allocation4]
    $region5: #{tpu_custom_call.1} parent=1 // pred_fallthru
      _
    // Predicated region
    $region6: #{tpu_custom_call.1} parent=1 // pred_check
      _
    $region7: #{tpu_custom_call.1} parent=1 // pred_check_branch
      %25 = sbr.rel (0) target = $region9
    $region8: #{tpu_custom_call.1} parent=1 // pred_region
      %s26 = sadd.s32 0, 0
      %s28 = ssub.s32 128, 128
      %29 = vsyncadd [#allocation7], %s28
      %s30 = smul.addr %s26, 4
      %s31 = smul.addr %s30, 32
      %s32 = scalar_lea.hbm %s1, %s31
      %s34 = sshll.u32 [#allocation6], 4
      %s35 = int_to_ptr.vmem [resolvable:$true] %s34
      %37 = dma.hbm_to_vmem [thread:$0]  %s32, 128, %s35, [#allocation7]
    $region9: #{tpu_custom_call.1} parent=1 // pred_fallthru
      _
    // Predicated region
    $region10: #{tpu_custom_call.1} parent=1 // pred_check
      _
    $region11: #{tpu_custom_call.1} parent=1 // pred_check_branch
      %39 = sbr.rel (0) target = $region13
    $region12: #{tpu_custom_call.1} parent=1 // pred_region
      %40 = dma.done [#allocation4], 128
    $region13: #{tpu_custom_call.1} parent=1 // pred_fallthru
      _
    // Predicated region
    $region14: #{tpu_custom_call.1} parent=1 // pred_check
      _
    $region15: #{tpu_custom_call.1} parent=1 // pred_check_branch
      %42 = sbr.rel (0) target = $region17
    $region16: #{tpu_custom_call.1} parent=1 // pred_region
      %43 = dma.done [#allocation7], 128
    $region17: #{tpu_custom_call.1} parent=1 // pred_fallthru
      _
    %s44 = sadd.s32 0, 0
    %s45 = sadd.s32 0, 0
    %p46 = scmp.eq.s32.totalorder 0, 0
    // Predicated region
    $region18: #{tpu_custom_call.1} parent=1 // pred_check
      %p47 = pneg %p46
    $region19: #{tpu_custom_call.1} parent=1 // pred_check_branch
      %49 = sbr.rel (%p47) target = $region21
    $region20: #{tpu_custom_call.1} parent=1 // pred_region
      %v50 = vlaneseq
      %vm51 = vcmp.ge.s32.totalorder %v50, 0
      %vm52 = vcmp.lt.s32.totalorder %v50, 512
      %vm53 = vmand %vm51, %vm52
      %54 = vst.msk [vmem:[#allocation2] sm:$0xf] %vm53, 0.0
    $region21: #{tpu_custom_call.1} parent=1 // pred_fallthru
      _
    %v55 = vld [vmem:[#allocation3] sm:$0xff]
    %v56 = vld [vmem:[#allocation6] sm:$0xff]
    %v57 = vsub.f32 %v55, %v56
    %v58 = vmul.f32 %v57, %v57
    %v59 = vmul.f32 %v55, %v56
    %v60 = vmul.f32 %v59, -5000.0
    %v61 = vtanh.pop %v60
    %v62 = vadd.f32 %v61, 1.0
    %v63 = vmul.f32 %v62, 0.5
    %v64 = vmul.f32 %v63, 2.0
    %v65 = vsub.f32 3.5, %v64
    %v66 = vrcp.pop %v65
    %v67 = vmul.f32 %v65, %v66
    %v68 = vsub.f32 2.0, %v67
    %v69 = vmul.f32 %v66, %v68
    %v70 = vmul.f32 %v58, 2.5
    %v71 = vmul.f32 %v70, %v69
    %v72 = vld [vmem:[#allocation2] sm:$0xf]
    %v74 = vcombine.high %v71, %v71
    %v76 = vunpack.c.l.s4 1983009808
    %v77 = vunpack.c.0.s8 %v76
    %v78 = vlaneseq
    %v79 = vshrl.u32 %v78, 7
    %v80 = vsub.s32 %v77, %v79
    %v81 = vrot.slane %v71, %v80
    %v83 = vunpack.c.l.s4 1983009808
    %v84 = vunpack.c.0.s8 %v83
    %v85 = vlaneseq
    %v86 = vshrl.u32 %v85, 7
    %v87 = vsub.s32 %v84, %v86
    %v88 = vrot.slane %v74, %v87
    %v89 = vcombine.high %v81, %v81
    %v90 = vcombine.high %v88, %v88
    %vm95 = vcmask 1041408
    %v96 = vsel %vm95, %v81, 0.0
    %v97 = vrot.slane %v96, 4
    %v98 = vadd.f32 %v96, %v97
    %v99 = vrot.slane %v98, 2
    %v100 = vadd.f32 %v98, %v99
    %v101 = vrot.slane %v100, 1
    %v102 = vadd.f32 %v100, %v101
    %v103 = vsel %vm95, %v89, 0.0
    %v104 = vrot.slane %v103, 4
    %v105 = vadd.f32 %v103, %v104
    %v106 = vrot.slane %v105, 2
    %v107 = vadd.f32 %v105, %v106
    %v108 = vrot.slane %v107, 1
    %v109 = vadd.f32 %v107, %v108
    %v110 = vsel %vm95, %v88, 0.0
    %v111 = vrot.slane %v110, 4
    %v112 = vadd.f32 %v110, %v111
    %v113 = vrot.slane %v112, 2
    %v114 = vadd.f32 %v112, %v113
    %v115 = vrot.slane %v114, 1
    %v116 = vadd.f32 %v114, %v115
    %v117 = vsel %vm95, %v90, 0.0
    %v118 = vrot.slane %v117, 4
    %v119 = vadd.f32 %v117, %v118
    %v120 = vrot.slane %v119, 2
    %v121 = vadd.f32 %v119, %v120
    %v122 = vrot.slane %v121, 1
    %v123 = vadd.f32 %v121, %v122
    %v128 = vcombine.low %v102, %v109
    %v129 = vcombine.low %v116, %v123
    %v131 = vunpack.c.l.s4 1966171168
    %v132 = vunpack.c.0.s8 %v131
    %v133 = vlaneseq
    %v134 = vshrl.u32 %v133, 7
    %v135 = vsub.s32 %v132, %v134
    %v136 = vrot.slane %v128, %v135
    %v138 = vunpack.c.l.s4 1966171168
    %v139 = vunpack.c.0.s8 %v138
    %v140 = vlaneseq
    %v141 = vshrl.u32 %v140, 7
    %v142 = vsub.s32 %v139, %v141
    %v143 = vrot.slane %v129, %v142
    %v144 = vcombine.low %v136, %v143
    %v146 = vunpack.c.l.s4 1966171168
    %v147 = vunpack.c.0.s8 %v146
    %v148 = vlaneseq
    %v149 = vshrl.u32 %v148, 7
    %v150 = vsub.s32 %v147, %v149
    %v151 = vrot.slane %v144, %v150
    %v153 = vadd.f32 %v72, %v151
    %v154 = vlaneseq
    %vm155 = vcmp.ge.s32.totalorder %v154, 0
    %vm156 = vcmp.lt.s32.totalorder %v154, 512
    %vm157 = vmand %vm155, %vm156
    %158 = vst.msk [vmem:[#allocation2] sm:$0xf] %vm157, %v153
    // Predicated region
    $region22: #{tpu_custom_call.1} parent=1 // pred_check
      %p159 = pneg %p46
    $region23: #{tpu_custom_call.1} parent=1 // pred_check_branch
      %161 = sbr.rel (%p159) target = $region25
    $region24: #{tpu_custom_call.1} parent=1 // pred_region
      %v162 = vld [vmem:[#allocation2] sm:$0xf]
      %v164 = vlaneseq
      %v165 = vshrl.u32 %v164, 7
      %v166 = vsub.s32 0, %v165
      %v167 = vrot.slane %v162, %v166
      %v168 = vlaneseq
      %v169 = vshrl.u32 %v168, 7
      %v170 = vsub.s32 1, %v169
      %v171 = vrot.slane %v162, %v170
      %v172 = vlaneseq
      %v173 = vshrl.u32 %v172, 7
      %v174 = vsub.s32 2, %v173
      %v175 = vrot.slane %v162, %v174
      %v176 = vlaneseq
      %v177 = vshrl.u32 %v176, 7
      %v178 = vsub.s32 3, %v177
      %v179 = vrot.slane %v162, %v178
      %vm184 = vcmask 1040384
      %v185 = vsel %vm184, %v167, 0.0
      %v186 = vsel %vm184, %v171, 0.0
      %v187 = vadd.f32 %v185, %v186
      %v188 = vsel %vm184, %v175, 0.0
      %v189 = vadd.f32 %v187, %v188
      %v190 = vsel %vm184, %v179, 0.0
      %v191 = vadd.f32 %v189, %v190
      %192 = vadd.xlane.f32.xlu0 %v191
      %v193 = vpop.xlane.xlu0 %192
      %v194 = vrot.slane %v193, 4
      %v195 = vadd.f32 %v193, %v194
      %v196 = vrot.slane %v195, 2
      %v197 = vadd.f32 %v195, %v196
      %v198 = vrot.slane %v197, 1
      %v199 = vadd.f32 %v197, %v198
      %s200 = vtos %v199
      %v201 = vstv %s200
      %vm202 = vcmask 0
      %203 = vst.msk [vmem:[#allocation8] sm:$0x1] %vm202, %v201
    $region25: #{tpu_custom_call.1} parent=1 // pred_fallthru
      _
    // Predicated region
    $region26: #{tpu_custom_call.1} parent=1 // pred_check
      _
    $region27: #{tpu_custom_call.1} parent=1 // pred_check_branch
      %205 = sbr.rel (0) target = $region29
    $region28: #{tpu_custom_call.1} parent=1 // pred_region
      %s207 = ssub.s32 16, 16
      %208 = vsyncadd [#allocation5], %s207
      %s210 = sshll.u32 [#allocation8], 4
      %s211 = int_to_ptr.vmem [resolvable:$true] %s210
      %213 = dma.vmem_to_hbm [thread:$0]  %s211, 16, %s2, [#allocation5]
    $region29: #{tpu_custom_call.1} parent=1 // pred_fallthru
      _
    // Predicated region
    $region30: #{tpu_custom_call.1} parent=1 // pred_check
      _
    $region31: #{tpu_custom_call.1} parent=1 // pred_check_branch
      %215 = sbr.rel (0) target = $region33
    $region32: #{tpu_custom_call.1} parent=1 // pred_region
      %216 = dma.done [#allocation5], 16
    $region33: #{tpu_custom_call.1} parent=1 // pred_fallthru
      _
    %217 = vsyncpa [#allocation4], 1
    %218 = vsyncpa [#allocation7], 1
    %219 = vsyncpa [#allocation5], 1

</llo_original>
